<compile_context>
chip_gen: v7x
topology: tpu7x:2x2x1
jax: 0.10.0
libtpu: 0.0.40
codegen_flags: <defaults>
</compile_context>

<pallas_src>
import functools

import jax
import jax.numpy as jnp
from jax import lax
from jax.experimental import pallas as pl
from jax.experimental.pallas import tpu as pltpu


# ----------------------------------------------------------------------------
# generation-aware defaults
# ----------------------------------------------------------------------------
def _tpu_generation():
    try:
        kind = jax.devices()[0].device_kind.lower()
    except Exception:
        return 6
    for g in (7, 6, 5, 4, 3):
        if f"v{g}" in kind:
            return g
    return 6


_GEN = _tpu_generation()
if _GEN >= 7:           # v7x: 64 MiB VMEM per core -> tighter tiles / budget
    _MM_BM, _MM_BN, _MM_BK = 256, 256, 512
    _VMEM_LIMIT = 32 * 1024 * 1024
else:                   # v5e / v6e: 128 MiB VMEM -> bigger tiles, raise limit
    _MM_BM, _MM_BN, _MM_BK = 512, 512, 512
    _VMEM_LIMIT = 64 * 1024 * 1024


def _round_up(n, m):
    return -(-n // m) * m


def _pick_tile(n, target, align):
    """Largest multiple of `align` dividing n and <= target, else n (full dim)."""
    if n <= target:
        return n
    t = (target // align) * align
    while t >= align:
        if n % t == 0:
            return t
        t -= align
    return n


def _balanced_tile(n, target, align):
    """Tile size (multiple of align) and padded extent with balanced steps."""
    steps = -(-n // target)
    tile = _round_up(-(-n // steps), align)
    return tile, tile * steps


# ----------------------------------------------------------------------------
# Tiled, K-accumulating matmul kernels (optionally fused bias)
# ----------------------------------------------------------------------------
def _mm_kernel(x_ref, w_ref, o_ref, acc_ref):
    @pl.when(pl.program_id(2) == 0)
    def _():
        acc_ref[...] = jnp.zeros_like(acc_ref)

    acc_ref[...] += jnp.dot(x_ref[...], w_ref[...],
                            preferred_element_type=jnp.float32)

    @pl.when(pl.program_id(2) == pl.num_programs(2) - 1)
    def _():
        o_ref[...] = acc_ref[...].astype(o_ref.dtype)


def _mm_bias_kernel(x_ref, w_ref, b_ref, o_ref, acc_ref):
    @pl.when(pl.program_id(2) == 0)
    def _():
        acc_ref[...] = jnp.zeros_like(acc_ref)

    acc_ref[...] += jnp.dot(x_ref[...], w_ref[...],
                            preferred_element_type=jnp.float32)

    @pl.when(pl.program_id(2) == pl.num_programs(2) - 1)
    def _():
        o_ref[...] = (acc_ref[...] + b_ref[...]).astype(o_ref.dtype)


def matmul(x, w, bias=None, *, out_dtype=jnp.float32):
    """y = x @ w (+ bias).  x:(M,K), w:(K,N), bias:(N,) or None."""
    M, K = x.shape
    K2, N = w.shape
    assert K == K2
    bm, m_pad = _balanced_tile(M, _MM_BM, 8)
    if m_pad != M:
        x = jnp.pad(x, ((0, m_pad - M), (0, 0)))
    bn = _pick_tile(N, _MM_BN, 128)
    bk = _pick_tile(K, _MM_BK, 128)
    grid = (m_pad // bm, N // bn, K // bk)

    common = dict(
        out_shape=jax.ShapeDtypeStruct((m_pad, N), out_dtype),
        grid=grid,
        out_specs=pl.BlockSpec((bm, bn), lambda i, j, k: (i, j)),
        scratch_shapes=[pltpu.VMEM((bm, bn), jnp.float32)],
        compiler_params=pltpu.CompilerParams(
            dimension_semantics=("parallel", "parallel", "arbitrary"),
            vmem_limit_bytes=_VMEM_LIMIT),
    )
    x_spec = pl.BlockSpec((bm, bk), lambda i, j, k: (i, k))
    w_spec = pl.BlockSpec((bk, bn), lambda i, j, k: (k, j))

    if bias is None:
        out = pl.pallas_call(_mm_kernel, in_specs=[x_spec, w_spec],
                             **common)(x, w)
    else:
        b2d = bias.reshape(1, N).astype(jnp.float32)
        b_spec = pl.BlockSpec((1, bn), lambda i, j, k: (0, j))
        out = pl.pallas_call(_mm_bias_kernel, in_specs=[x_spec, w_spec, b_spec],
                             **common)(x, w, b2d)
    return out[:M] if m_pad != M else out


# ----------------------------------------------------------------------------
# Attention: flash-style online softmax over a tiled compressed-KV axis,
# null k/v row fused into the initialization, lane-dense (1, tq, d) output.
# ----------------------------------------------------------------------------
def _attn_kernel(q_ref, k_ref, v_ref, nk_ref, nv_ref, o_ref,
                 m_sc, l_sc, acc_sc, *, heads, s_valid, tkv, mask_kv):
    kv_i = pl.program_id(2)
    tq = q_ref.shape[1]
    d = q_ref.shape[2]
    dh = d // heads
    q = q_ref[0]                                    # (tq, d)  (scale pre-folded)
    k = k_ref[0]                                    # (tkv, d)
    v = v_ref[0]

    @pl.when(kv_i == 0)
    def _():
        # null key/value row becomes the online-softmax initial state:
        #   m = q . null_k, l = 1, acc = null_v   (per head)
        nk = nk_ref[...]                            # (1, d)
        nv = nv_ref[...]                            # (1, d) f32
        for h in range(heads):
            lo, hi = h * dh, (h + 1) * dh
            ndots = lax.dot_general(q[:, lo:hi], nk[:, lo:hi],
                                    (((1,), (1,)), ((), ())),
                                    preferred_element_type=jnp.float32)
            m_sc[h] = ndots
            l_sc[h] = jnp.ones_like(ndots)
            acc_sc[h] = jnp.broadcast_to(nv[:, lo:hi], (tq, dh))

    if mask_kv:
        col = kv_i * tkv + lax.broadcasted_iota(jnp.int32, (1, tkv), 1)
        col_ok = col < s_valid                      # (1, tkv)

    for h in range(heads):
        lo, hi = h * dh, (h + 1) * dh
        qh, kh, vh = q[:, lo:hi], k[:, lo:hi], v[:, lo:hi]
        dots = lax.dot_general(qh, kh, (((1,), (1,)), ((), ())),
                               preferred_element_type=jnp.float32)   # (tq, tkv)
        if mask_kv:
            dots = jnp.where(col_ok, dots, -jnp.inf)
        m_prev = m_sc[h]
        m_new = jnp.maximum(m_prev, jnp.max(dots, axis=-1, keepdims=True))
        alpha = jnp.exp(m_prev - m_new)
        p = jnp.exp(dots - m_new)
        l_sc[h] = alpha * l_sc[h] + jnp.sum(p, axis=-1, keepdims=True)
        acc_sc[h] = alpha * acc_sc[h] + jnp.dot(p.astype(vh.dtype), vh,
                                                preferred_element_type=jnp.float32)
        m_sc[h] = m_new

    @pl.when(kv_i == pl.num_programs(2) - 1)
    def _():
        outs = []
        for h in range(heads):
            l = l_sc[h]
            # EUP reciprocal + 2 Newton refinements (f32-level accuracy).
            r = pl.reciprocal(l, approx=True)
            r = r * (2.0 - l * r)
            r = r * (2.0 - l * r)
            outs.append(acc_sc[h] * r)
        # single lane-dense store of the whole (tq, d) tile
        o_ref[0] = jnp.concatenate(outs, axis=-1).astype(o_ref.dtype)


def attention(q, k, v, null_k, null_v, heads, *, out_dtype,
              tq_target=256, tkv_target=512):
    """q:(b,t,d), k/v:(b,s,d) compressed (no null row), null_k/v:(1,d)."""
    b, t, d = q.shape
    s = k.shape[1]
    dh = d // heads

    tq, t_pad = _balanced_tile(t, tq_target, 8)
    if t_pad != t:
        q = jnp.pad(q, ((0, 0), (0, t_pad - t), (0, 0)))
    tkv, s_pad = _balanced_tile(s, tkv_target, 8)
    if s_pad != s:
        k = jnp.pad(k, ((0, 0), (0, s_pad - s), (0, 0)))
        v = jnp.pad(v, ((0, 0), (0, s_pad - s), (0, 0)))

    kern = functools.partial(_attn_kernel, heads=heads, s_valid=s, tkv=tkv,
                             mask_kv=(s_pad != s))
    out = pl.pallas_call(
        kern,
        out_shape=jax.ShapeDtypeStruct((b, t_pad, d), out_dtype),
        grid=(b, t_pad // tq, s_pad // tkv),
        in_specs=[
            pl.BlockSpec((1, tq, d), lambda bi, qi, ki: (bi, qi, 0)),
            pl.BlockSpec((1, tkv, d), lambda bi, qi, ki: (bi, ki, 0)),
            pl.BlockSpec((1, tkv, d), lambda bi, qi, ki: (bi, ki, 0)),
            pl.BlockSpec((1, d), lambda bi, qi, ki: (0, 0)),
            pl.BlockSpec((1, d), lambda bi, qi, ki: (0, 0)),
        ],
        out_specs=pl.BlockSpec((1, tq, d), lambda bi, qi, ki: (bi, qi, 0)),
        scratch_shapes=[
            pltpu.VMEM((heads, tq, 1), jnp.float32),    # running max  (m)
            pltpu.VMEM((heads, tq, 1), jnp.float32),    # running denom (l)
            pltpu.VMEM((heads, tq, dh), jnp.float32),   # running numerator
        ],
        compiler_params=pltpu.CompilerParams(
            dimension_semantics=("parallel", "parallel", "arbitrary"),
            vmem_limit_bytes=_VMEM_LIMIT),
    )(q, k, v, null_k, null_v)
    return out[:, :t] if t_pad != t else out


# ----------------------------------------------------------------------------
# Parameters (torch layout) + one-time kernel-friendly fusion / re-layout
# ----------------------------------------------------------------------------
def init_params(key, dim, heads, cf):
    dg = dim // heads
    k1, k2, k3, k4, k5 = jax.random.split(key, 5)
    return dict(
        qkv_w=0.05 * jax.random.normal(k1, (3 * dim, dim), jnp.float32),
        conv_w=0.05 * jax.random.normal(k2, (dim, dg, cf), jnp.float32),
        conv_b=0.05 * jax.random.normal(k3, (dim,), jnp.float32),
        out_w=0.05 * jax.random.normal(k4, (dim, dim), jnp.float32),
        out_b=0.05 * jax.random.normal(k5, (dim,), jnp.float32),
        null_k=jnp.zeros((1, 1, dim), jnp.float32),
        null_v=jnp.zeros((1, 1, dim), jnp.float32),
    )


def prepare_params(params, dim, heads, cf, compute_dtype=jnp.float32):
    """One-time weight fusion / re-layout (hoisted out of forward):
       * softmax scale (dim**-0.5, torch semantics) folded into the Q weight;
       * grouped strided Conv1d compression folded into the K / V projection,
         giving a single (cf*dim, dim) weight per projection."""
    dg = dim // heads
    scale = float(dim) ** -0.5
    qkv_w = params["qkv_w"]
    w_q, w_k, w_v = qkv_w[:dim], qkv_w[dim:2 * dim], qkv_w[2 * dim:]
    conv_w = params["conv_w"]                         # (dim, dg, cf)

    def fused_kv_weight(w_proj):
        wp = w_proj.reshape(heads, dg, dim)           # [h, ci, m]
        cw = conv_w.reshape(heads, dg, dg, cf)        # [h, og, ci, j]
        comb = jnp.einsum("hcm,hocj->jmho", wp, cw)   # (cf, dim, heads, dg)
        return comb.reshape(cf * dim, dim)

    return dict(
        q_wT=(w_q.T * scale).astype(compute_dtype),
        kc_w=fused_kv_weight(w_k).astype(compute_dtype),
        vc_w=fused_kv_weight(w_v).astype(compute_dtype),
        conv_b=params["conv_b"].astype(jnp.float32),
        out_wT=params["out_w"].T.astype(compute_dtype),
        out_b=params["out_b"].astype(jnp.float32),
        null_k=params["null_k"].reshape(1, dim).astype(compute_dtype),
        null_v=params["null_v"].reshape(1, dim).astype(jnp.float32),
    )


# ----------------------------------------------------------------------------
# Forward pass (mirrors MemoryCompressedAttention.forward with module defaults)
# ----------------------------------------------------------------------------
def memory_compressed_attention(params, x, heads, cf, compute_dtype=jnp.float32):
    b, t, d = x.shape
    cdt = compute_dtype
    x_c = x.astype(cdt)

    # Q projection (no bias; scale folded into the weight)
    q = matmul(x_c.reshape(b * t, d), params["q_wT"], out_dtype=cdt)
    q = q.reshape(b, t, d)

    # K / V: projection + grouped strided Conv1d compression fused into one
    # matmul over rows of cf consecutive timesteps (front-padded with zeros;
    # valid because to_qkv has no bias).
    padding = (-t) % cf
    x_p = jnp.pad(x_c, ((0, 0), (padding, 0), (0, 0))) if padding else x_c
    t_c = (t + padding) // cf
    xg = x_p.reshape(b * t_c, cf * d)
    k_c = matmul(xg, params["kc_w"], params["conv_b"],
                 out_dtype=cdt).reshape(b, t_c, d)
    v_c = matmul(xg, params["vc_w"], params["conv_b"],
                 out_dtype=cdt).reshape(b, t_c, d)

    # attention over compressed memory (null k/v row fused in-kernel)
    out = attention(q, k_c, v_c, params["null_k"], params["null_v"], heads,
                    out_dtype=cdt)

    # output projection
    out = matmul(out.reshape(b * t, d), params["out_wT"], params["out_b"],
                 out_dtype=jnp.float32)
    return out.reshape(b, t, d)


# ----------------------------------------------------------------------------
# Pure-JAX reference (torch semantics, for correctness check)
# ----------------------------------------------------------------------------
def reference(params, x, heads, cf):
    b, t, d = x.shape
    dg = d // heads
    qkv = x @ params["qkv_w"].T
    q, k, v = jnp.split(qkv, 3, axis=-1)
    padding = cf - t % cf
    if padding < cf:
        k = jnp.pad(k, ((0, 0), (padding, 0), (0, 0)))
        v = jnp.pad(v, ((0, 0), (padding, 0), (0, 0)))
    t_c = k.shape[1] // cf

    def compress_ref(m):
        m = m.reshape(b, t_c, cf, heads, dg)
        w = params["conv_w"].reshape(heads, dg, dg, cf)   # [h, oc, ci, j]
        out = jnp.einsum("btjhc,hocj->btho", m, w).reshape(b, t_c, d)
        return out + params["conv_b"]

    k = compress_ref(k)
    v = compress_ref(v)
    k = jnp.concatenate([jnp.broadcast_to(params["null_k"], (b, 1, d)), k], axis=1)
    v = jnp.concatenate([jnp.broadcast_to(params["null_v"], (b, 1, d)), v], axis=1)
    s = k.shape[1]
    qh = q.reshape(b, t, heads, dg).transpose(0, 2, 1, 3)
    kh = k.reshape(b, s, heads, dg).transpose(0, 2, 1, 3)
    vh = v.reshape(b, s, heads, dg).transpose(0, 2, 1, 3)
    dots = jnp.einsum("bhid,bhjd->bhij", qh, kh) * (float(d) ** -0.5)
    attn = jax.nn.softmax(dots, axis=-1)
    out = jnp.einsum("bhij,bhjd->bhid", attn, vh)
    out = out.transpose(0, 2, 1, 3).reshape(b, t, d)
    return out @ params["out_w"].T + params["out_b"]


# ----------------------------------------------------------------------------
if __name__ == "__main__":
    dim, heads, cf = 64, 8, 3
    b, t = 2, 8                  # t % cf != 0 -> exercises padding + KV masking

    key = jax.random.PRNGKey(0)
    pkey, xkey = jax.random.split(key)
    raw = init_params(pkey, dim, heads, cf)
    x = jax.random.normal(xkey, (b, t, dim), jnp.float32)

    ref = reference(raw, x, heads, cf)

    # f32 MXU-input path (tight check)
    params_f32 = prepare_params(raw, dim, heads, cf, compute_dtype=jnp.float32)
    out = memory_compressed_attention(params_f32, x, heads, cf,
                                      compute_dtype=jnp.float32)
    out = jax.block_until_ready(out)
    assert out.shape == (b, t, dim)
    err = jnp.max(jnp.abs(out - ref))
    assert jnp.allclose(out, ref, rtol=2e-4, atol=2e-4), f"f32 max abs err {err}"

    # bf16 MXU-input / f32-accumulate path (loose check)
    params_bf = prepare_params(raw, dim, heads, cf, compute_dtype=jnp.bfloat16)
    out_bf = memory_compressed_attention(params_bf, x, heads, cf,
                                         compute_dtype=jnp.bfloat16)
    out_bf = jax.block_until_ready(out_bf)
    err_bf = jnp.max(jnp.abs(out_bf - ref))
    assert jnp.allclose(out_bf, ref, rtol=2e-2, atol=2e-2), \
        f"bf16 max abs err {err_bf}"

    print("KERNEL_OK")
</pallas_src>

<mosaic_0001>
module attributes {stable_mosaic.version = 11 : i64} {
  func.func @_mm_kernel(%arg0: i32, %arg1: i32, %arg2: i32, %arg3: memref<16x64xf32, #tpu.memory_space<vmem>>, %arg4: memref<64x64xf32, #tpu.memory_space<vmem>>, %arg5: memref<16x64xf32, #tpu.memory_space<vmem>>, %arg6: memref<16x64xf32, #tpu.memory_space<vmem>>) attributes {dimension_semantics = [#tpu.dimension_semantics<parallel>, #tpu.dimension_semantics<parallel>, #tpu.dimension_semantics<arbitrary>], iteration_bounds = array<i64: 1, 1, 1>, scalar_prefetch = 0 : i64, scratch_operands = 1 : i64, tpu.core_type = #tpu.core_type<tc>, window_params = [{transform_indices = @transform_0, window_bounds = array<i64: 16, 64>}, {transform_indices = @transform_1, window_bounds = array<i64: 64, 64>}, {transform_indices = @transform_2, window_bounds = array<i64: 16, 64>}]} {
    %c0_i32 = arith.constant 0 : i32
    %0 = arith.cmpi eq, %arg2, %c0_i32 : i32
    %1 = arith.extui %0 : i1 to i32
    %c0_i32_0 = arith.constant 0 : i32
    %2 = arith.cmpi ne, %1, %c0_i32_0 : i32
    scf.if %2 {
      %cst_10 = arith.constant 0.000000e+00 : f32
      %12 = vector.broadcast %cst_10 : f32 to vector<16x64xf32>
      %c0_11 = arith.constant 0 : index
      %c0_12 = arith.constant 0 : index
      %13 = vector.load %arg6[%c0_11, %c0_12] : memref<16x64xf32, #tpu.memory_space<vmem>>, vector<16x64xf32>
      tpu.vector_store %arg6[%c0_11, %c0_12], %12 {strides = array<i32>} : memref<16x64xf32, #tpu.memory_space<vmem>>, vector<16x64xf32>,
    } else {
    }
    %c0 = arith.constant 0 : index
    %c0_1 = arith.constant 0 : index
    %3 = vector.load %arg6[%c0, %c0_1] : memref<16x64xf32, #tpu.memory_space<vmem>>, vector<16x64xf32>
    %c0_2 = arith.constant 0 : index
    %c0_3 = arith.constant 0 : index
    %4 = vector.load %arg3[%c0_2, %c0_3] : memref<16x64xf32, #tpu.memory_space<vmem>>, vector<16x64xf32>
    %c0_4 = arith.constant 0 : index
    %c0_5 = arith.constant 0 : index
    %5 = vector.load %arg4[%c0_4, %c0_5] : memref<64x64xf32, #tpu.memory_space<vmem>>, vector<64x64xf32>
    %cst = arith.constant dense<0.000000e+00> : vector<16x64xf32>
    %6 = tpu.matmul %4, %5, %cst {dimension_numbers = #tpu.dot_dimension_numbers<[1], [0], [0], [1], [0, 0, 1, 1], [], []>} : vector<16x64xf32>, vector<64x64xf32>, vector<16x64xf32> -> vector<16x64xf32>
    %7 = arith.addf %3, %6 : vector<16x64xf32>
    %c0_6 = arith.constant 0 : index
    %c0_7 = arith.constant 0 : index
    %8 = vector.load %arg6[%c0_6, %c0_7] : memref<16x64xf32, #tpu.memory_space<vmem>>, vector<16x64xf32>
    tpu.vector_store %arg6[%c0_6, %c0_7], %7 {strides = array<i32>} : memref<16x64xf32, #tpu.memory_space<vmem>>, vector<16x64xf32>,
    %c0_i32_8 = arith.constant 0 : i32
    %9 = arith.cmpi eq, %arg2, %c0_i32_8 : i32
    %10 = arith.extui %9 : i1 to i32
    %c0_i32_9 = arith.constant 0 : i32
    %11 = arith.cmpi ne, %10, %c0_i32_9 : i32
    scf.if %11 {
      %c0_10 = arith.constant 0 : index
      %c0_11 = arith.constant 0 : index
      %12 = vector.load %arg6[%c0_10, %c0_11] : memref<16x64xf32, #tpu.memory_space<vmem>>, vector<16x64xf32>
      %c0_12 = arith.constant 0 : index
      %c0_13 = arith.constant 0 : index
      %13 = vector.load %arg5[%c0_12, %c0_13] : memref<16x64xf32, #tpu.memory_space<vmem>>, vector<16x64xf32>
      tpu.vector_store %arg5[%c0_12, %c0_13], %12 {strides = array<i32>} : memref<16x64xf32, #tpu.memory_space<vmem>>, vector<16x64xf32>,
    } else {
    }
    return
  }
  func.func @transform_0(%arg0: i32, %arg1: i32, %arg2: i32) -> (i32, i32) {
    %c0_i32 = arith.constant 0 : i32
    return %arg0, %arg2 : i32, i32
  }
  func.func @transform_1(%arg0: i32, %arg1: i32, %arg2: i32) -> (i32, i32) {
    %c0_i32 = arith.constant 0 : i32
    return %arg2, %arg1 : i32, i32
  }
  func.func @transform_2(%arg0: i32, %arg1: i32, %arg2: i32) -> (i32, i32) {
    %c0_i32 = arith.constant 0 : i32
    return %arg0, %arg1 : i32, i32
  }
}

</mosaic_0001>

<llo_original>
// kernel: tpu_custom_call.1
$region0: #{tpu_custom_call.1}
  #allocation0 [shape = 'u32[]', space=smem, size = 0x4, offset = 0x4, fixed_abs, tag = 'smem constant byte address 0x4 - core index']
  #allocation1 [shape = 'u32[144,128]{1,0:T(1,128)}', space=vmem, size = 0x12000, scoped, tag = 'internal scratch']
  #allocation2 [shape = 'f32[16,64]{1,0:T(8,128)}', space=vmem, size = 0x2000, scoped, tag = 'scratch operand']
  %s0 = inlined_call_operand.hbm [shape: f32[16,64], index: 0, kind: input, shape index: {}]
  %s1 = inlined_call_operand.hbm [shape: f32[64,64], index: 1, kind: input, shape index: {}]
  %s2 = inlined_call_operand.hbm [shape: f32[16,64], index: 2, kind: output, shape index: {}]
  %s3 = sld [smem:[#allocation0]]
  $region34: #{tpu_custom_call.1} parent=0
    _
  %s5 = ssub.s32 1, %s3
  %s6 = scalar_select 0, %s5, %s3
  $region1: #{tpu_custom_call.1} parent=0
    #allocation3 [shape = 'u8[8192]{0}', space=vmem, size = 0x2000, scoped, tag = 'input window, operand 0, single buffered']
    #allocation4 [shape = 's32[1]{0}', space=sflag, size = 0x4, scoped, tag = 'scoped memory for tpu_custom_call.1']
    #allocation5 [shape = 's32[1]{0}', space=sflag, size = 0x4, scoped, tag = 'scoped memory for tpu_custom_call.1']
    #allocation6 [shape = 'u8[32768]{0}', space=vmem, size = 0x8000, scoped, tag = 'input window, operand 1, single buffered']
    #allocation7 [shape = 's32[1]{0}', space=sflag, size = 0x4, scoped, tag = 'scoped memory for tpu_custom_call.1']
    #allocation8 [shape = 'u8[8192]{0}', space=vmem, size = 0x2000, scoped, tag = 'output window, operand 0, single buffered']
    %7 = vsyncpa [#allocation4], 0
    %8 = vsyncpa [#allocation7], 0
    %9 = vsyncpa [#allocation5], 0
    // Predicated region
    $region2: #{tpu_custom_call.1} parent=1 // pred_check
      _
    $region3: #{tpu_custom_call.1} parent=1 // pred_check_branch
      %11 = sbr.rel (0) target = $region5
    $region4: #{tpu_custom_call.1} parent=1 // pred_region
      %s13 = ssub.s32 256, 256
      %14 = vsyncadd [#allocation4], %s13
      %s15 = sshll.u32 [#allocation3], 4
      %s16 = int_to_ptr.vmem [resolvable:$true] %s15
      %21 = dma.hbm_to_vmem [thread:$0]  %s0, 256, %s16, [#allocation4], 128, 128, 8
    $region5: #{tpu_custom_call.1} parent=1 // pred_fallthru
      _
    // Predicated region
    $region6: #{tpu_custom_call.1} parent=1 // pred_check
      _
    $region7: #{tpu_custom_call.1} parent=1 // pred_check_branch
      %23 = sbr.rel (0) target = $region9
    $region8: #{tpu_custom_call.1} parent=1 // pred_region
      %s25 = ssub.s32 1024, 1024
      %26 = vsyncadd [#allocation7], %s25
      %s27 = sshll.u32 [#allocation6], 4
      %s28 = int_to_ptr.vmem [resolvable:$true] %s27
      %33 = dma.hbm_to_vmem [thread:$0]  %s1, 1024, %s28, [#allocation7], 128, 128, 8
    $region9: #{tpu_custom_call.1} parent=1 // pred_fallthru
      _
    // Predicated region
    $region10: #{tpu_custom_call.1} parent=1 // pred_check
      _
    $region11: #{tpu_custom_call.1} parent=1 // pred_check_branch
      %35 = sbr.rel (0) target = $region13
    $region12: #{tpu_custom_call.1} parent=1 // pred_region
      %36 = dma.done [#allocation4], 256
    $region13: #{tpu_custom_call.1} parent=1 // pred_fallthru
      _
    // Predicated region
    $region14: #{tpu_custom_call.1} parent=1 // pred_check
      _
    $region15: #{tpu_custom_call.1} parent=1 // pred_check_branch
      %38 = sbr.rel (0) target = $region17
    $region16: #{tpu_custom_call.1} parent=1 // pred_region
      %39 = dma.done [#allocation7], 1024
    $region17: #{tpu_custom_call.1} parent=1 // pred_fallthru
      _
    %p40 = scmp.eq.s32.totalorder 0, 0
    // Predicated region
    $region18: #{tpu_custom_call.1} parent=1 // pred_check
      %p41 = pneg %p40
    $region19: #{tpu_custom_call.1} parent=1 // pred_check_branch
      %43 = sbr.rel (%p41) target = $region21
    $region20: #{tpu_custom_call.1} parent=1 // pred_region
      %vm44 = vcmask 523264
      %45 = vst.msk [vmem:[#allocation2] sm:$0xff] %vm44, 0.0
      %46 = vst.msk [vmem:[#allocation2 + $0x8] sm:$0xff] %vm44, 0.0
    $region21: #{tpu_custom_call.1} parent=1 // pred_fallthru
      _
    %v47 = vld [vmem:[#allocation2] sm:$0xff]
    %v48 = vld [vmem:[#allocation2 + $0x8] sm:$0xff]
    %v49 = vld [vmem:[#allocation3] sm:$0xff]
    %v50 = vld [vmem:[#allocation3 + $0x8] sm:$0xff]
    %v51 = vld [vmem:[#allocation6] sm:$0xff]
    %v52 = vld [vmem:[#allocation6 + $0x8] sm:$0xff]
    %v53 = vld [vmem:[#allocation6 + $0x10] sm:$0xff]
    %v54 = vld [vmem:[#allocation6 + $0x18] sm:$0xff]
    %v55 = vld [vmem:[#allocation6 + $0x20] sm:$0xff]
    %v56 = vld [vmem:[#allocation6 + $0x28] sm:$0xff]
    %v57 = vld [vmem:[#allocation6 + $0x30] sm:$0xff]
    %v58 = vld [vmem:[#allocation6 + $0x38] sm:$0xff]
    %vm59 = vcmask 523264
    %v61 = vsel %vm59, %v49, 0
    %v64 = vsel %vm59, %v50, 0
    %66 = vmatprep.subr.mxu0 0.0
    %67 = vmatpush1.msra.mxu0 %v51
    %68 = vmatprep.subr.mxu0 0.0
    %69 = vmatpush1.msra.mxu0 %v52
    %70 = vmatprep.subr.mxu0 0.0
    %71 = vmatpush1.msra.mxu0 %v53
    %72 = vmatprep.subr.mxu0 0.0
    %73 = vmatpush1.msra.mxu0 %v54
    %74 = vmatprep.subr.mxu0 0.0
    %75 = vmatpush1.msra.mxu0 %v55
    %76 = vmatprep.subr.mxu0 0.0
    %77 = vmatpush1.msra.mxu0 %v56
    %78 = vmatprep.subr.mxu0 0.0
    %79 = vmatpush1.msra.mxu0 %v57
    %80 = vmatprep.subr.mxu0 0.0
    %81 = vmatpush1.msra.mxu0 %v58
    %82 = vmatprep.subr.mxu0 0.0
    %83 = vmatpush1.msra.mxu0 0.0
    %84 = vmatprep.subr.mxu0 0.0
    %85 = vmatpush1.msra.mxu0 0.0
    %86 = vmatprep.subr.mxu0 0.0
    %87 = vmatpush1.msra.mxu0 0.0
    %88 = vmatprep.subr.mxu0 0.0
    %89 = vmatpush1.msra.mxu0 0.0
    %90 = vmatprep.subr.mxu0 0.0
    %91 = vmatpush1.msra.mxu0 0.0
    %92 = vmatprep.subr.mxu0 0.0
    %93 = vmatpush1.msra.mxu0 0.0
    %94 = vmatprep.subr.mxu0 0.0
    %95 = vmatpush1.msra.mxu0 0.0
    %96 = vmatprep.subr.mxu0 0.0
    %97 = vmatpush1.msra.mxu0 0.0
    %98 = vmatprep.subr.mxu0 0.0
    %99 = vmatpush1.msra.mxu0 0.0
    %100 = vmatprep.subr.mxu0 0.0
    %101 = vmatpush1.msra.mxu0 0.0
    %102 = vmatprep.subr.mxu0 0.0
    %103 = vmatpush1.msra.mxu0 0.0
    %104 = vmatprep.subr.mxu0 0.0
    %105 = vmatpush1.msra.mxu0 0.0
    %106 = vmatprep.subr.mxu0 0.0
    %107 = vmatpush1.msra.mxu0 0.0
    %108 = vmatprep.subr.mxu0 0.0
    %109 = vmatpush1.msra.mxu0 0.0
    %110 = vmatprep.subr.mxu0 0.0
    %111 = vmatpush1.msra.mxu0 0.0
    %112 = vmatprep.subr.mxu0 0.0
    %113 = vmatpush1.msra.mxu0 0.0
    %114 = vmatprep.subr.mxu0 0.0
    %115 = vmatpush1.msra.mxu0 0.0
    %116 = vmatprep.subr.mxu0 0.0
    %117 = vmatpush1.msra.mxu0 0.0
    %118 = vmatprep.subr.mxu0 0.0
    %119 = vmatpush1.msra.mxu0 0.0
    %120 = vmatprep.subr.mxu0 0.0
    %121 = vmatpush1.msra.mxu0 0.0
    %122 = vmatprep.subr.mxu0 0.0
    %123 = vmatpush1.msra.mxu0 0.0
    %124 = vmatprep.subr.mxu0 0.0
    %125 = vmatpush1.msra.mxu0 0.0
    %126 = vmatprep.subr.mxu0 0.0
    %127 = vmatpush1.msra.mxu0 0.0
    %128 = vmatprep.subr.mxu0 0.0
    %129 = vmatpush1.msra.mxu0 0.0
    %130 = vmatprep.mubr.f32.mxu0 0.0
    %131 = vmatmul.mubr.f32.gmra.mrb[0].mxu0 %v61
    %v132 = vpop.f32.mrb[0].mxu0
    %v133 = vadd.f32 0.0, %v132
    %v134 = vpop.f32.mrb[0].mxu0
    %135 = vmatprep.mubr.f32.mxu0 0.0
    %136 = vmatmul.mubr.f32.gmra.mrb[0].mxu0 %v64
    %v137 = vpop.f32.mrb[0].mxu0
    %v138 = vadd.f32 0.0, %v137
    %v139 = vpop.f32.mrb[0].mxu0
    %140 = vdwg.mxu0
    %v141 = vadd.f32 %v47, %v133
    %v142 = vadd.f32 %v48, %v138
    %143 = vst.msk [vmem:[#allocation2] sm:$0xff] %vm59, %v141
    %144 = vst.msk [vmem:[#allocation2 + $0x8] sm:$0xff] %vm59, %v142
    // Predicated region
    $region22: #{tpu_custom_call.1} parent=1 // pred_check
      %p145 = pneg %p40
    $region23: #{tpu_custom_call.1} parent=1 // pred_check_branch
      %147 = sbr.rel (%p145) target = $region25
    $region24: #{tpu_custom_call.1} parent=1 // pred_region
      %v148 = vld [vmem:[#allocation2] sm:$0xff]
      %v149 = vld [vmem:[#allocation2 + $0x8] sm:$0xff]
      %150 = vst.msk [vmem:[#allocation8] sm:$0xff] %vm59, %v148
      %151 = vst.msk [vmem:[#allocation8 + $0x8] sm:$0xff] %vm59, %v149
    $region25: #{tpu_custom_call.1} parent=1 // pred_fallthru
      _
    // Predicated region
    $region26: #{tpu_custom_call.1} parent=1 // pred_check
      _
    $region27: #{tpu_custom_call.1} parent=1 // pred_check_branch
      %153 = sbr.rel (0) target = $region29
    $region28: #{tpu_custom_call.1} parent=1 // pred_region
      %s155 = ssub.s32 256, 256
      %156 = vsyncadd [#allocation5], %s155
      %s157 = sshll.u32 [#allocation8], 4
      %s158 = int_to_ptr.vmem [resolvable:$true] %s157
      %163 = dma.vmem_to_hbm [thread:$0]  %s158, 256, %s2, [#allocation5], 128, 128, 8
    $region29: #{tpu_custom_call.1} parent=1 // pred_fallthru
      _
    // Predicated region
    $region30: #{tpu_custom_call.1} parent=1 // pred_check
      _
    $region31: #{tpu_custom_call.1} parent=1 // pred_check_branch
      %165 = sbr.rel (0) target = $region33
    $region32: #{tpu_custom_call.1} parent=1 // pred_region
      %166 = dma.done [#allocation5], 256
    $region33: #{tpu_custom_call.1} parent=1 // pred_fallthru
      _
    %167 = vsyncpa [#allocation4], 1
    %168 = vsyncpa [#allocation7], 1
    %169 = vsyncpa [#allocation5], 1

</llo_original>
